<compile_context>
chip_gen: v7x
topology: tpu7x:2x2x1
jax: 0.10.0
libtpu: 0.0.40
codegen_flags: <defaults>
</compile_context>

<pallas_src>
import jax
import jax.numpy as jnp
from jax.experimental import pallas as pl
from jax.experimental.pallas import tpu as pltpu

LANE = 128  # TPU lane width


def _round_up(x, m):
    return ((x + m - 1) // m) * m


def _pick_hidden_tile(hp, max_tile=512):
    """Largest multiple of 128 that divides hp and is <= max_tile."""
    t = min(hp, max_tile)
    t = (t // LANE) * LANE
    while hp % t:
        t -= LANE
    return t


def lstm_cell_kernel(x_ref, h_ref, c_ref, w_ref, h_out_ref, c_out_ref, xh_ref):
    # x_ref    : (B, I)      f32  current input (replicated across tiles)
    # h_ref    : (B, Hp)     f32  previous hidden state, padded (replicated)
    # c_ref    : (B, T)      f32  previous cell state, this hidden tile
    # w_ref    : (Kp, 4*T)   bf16 fused pre-transposed weights,
    #                             K rows = [h (Hp) | x (I) | 0-pad],
    #                             gate order [f, i, c_bar, o] per tile
    # h_out_ref: (B, T)      f32
    # c_out_ref: (B, T)      f32
    # xh_ref   : (B, Kp)     f32  VMEM scratch: fused matmul operand
    b, isz = x_ref.shape
    hp = h_ref.shape[1]
    kp = xh_ref.shape[1]
    th = c_ref.shape[1]

    # Assemble the fused [h || x || 0] operand in VMEM scratch (no wrapper
    # concat -> no extra (B, K) HBM round-trip per step).  The tail is zeroed
    # explicitly so the zero-padded weight rows never multiply garbage.
    xh_ref[:, :hp] = h_ref[...]
    xh_ref[:, hp:] = jnp.zeros((b, kp - hp), xh_ref.dtype)
    xh_ref[:, hp:hp + isz] = x_ref[...]

    # Single MXU pass: bf16 operands, f32 accumulation.  Biases are zero by
    # module construction and therefore omitted entirely (no bias DMA/add).
    gates = jnp.dot(xh_ref[...].astype(w_ref.dtype), w_ref[...],
                    preferred_element_type=jnp.float32)

    def sigmoid(v):
        # tanh form: one EUP transcendental per element instead of exp+divide.
        return 0.5 * jnp.tanh(0.5 * v) + 0.5

    f = sigmoid(gates[:, 0 * th:1 * th])
    i = sigmoid(gates[:, 1 * th:2 * th])
    c_bar = jnp.tanh(gates[:, 2 * th:3 * th])
    o = sigmoid(gates[:, 3 * th:4 * th])

    c_next = f * c_ref[...] + i * c_bar
    h_out_ref[...] = (o * jnp.tanh(c_next)).astype(h_out_ref.dtype)
    c_out_ref[...] = c_next.astype(c_out_ref.dtype)


def lstm_cell(x, h_prev_pad, c_prev_pad, w_fused, *, max_hidden_tile=512):
    """One LSTMCell step on padded state.

    x           : (B, input_size) f32
    h_prev_pad  : (B, Hp) f32, Hp a multiple of 128, padded columns zero
    c_prev_pad  : (B, Hp) f32
    w_fused     : (Kp, NT*4*T) bf16 from make_params (same max_hidden_tile)
    Returns (h_next_pad, c_next_pad), both (B, Hp) f32.
    """
    B, input_size = x.shape
    Hp = h_prev_pad.shape[1]
    T = _pick_hidden_tile(Hp, max_hidden_tile)
    NT = Hp // T
    Kp = w_fused.shape[0]
    assert Hp % LANE == 0 and c_prev_pad.shape == (B, Hp)
    assert w_fused.shape[1] == NT * 4 * T
    assert Kp >= Hp + input_size and Kp % LANE == 0

    # Raise the VMEM limit only when production-sized tiles need it; cap well
    # under v7x's 64 MiB physical VMEM (v5e/v6e have 128 MiB).  On v7x prefer
    # max_hidden_tile=256 over raising this further.
    weight_tile_bytes = Kp * 4 * T * 2                       # bf16 weight tile
    state_tile_bytes = B * (Hp + input_size + Kp + 4 * T) * 4
    est = 2 * (weight_tile_bytes + state_tile_bytes)         # double-buffered
    vmem_limit = None if est <= 32 * 1024 * 1024 else min(est + (8 << 20),
                                                          56 * 1024 * 1024)

    h_next, c_next = pl.pallas_call(
        lstm_cell_kernel,
        out_shape=(jax.ShapeDtypeStruct((B, Hp), jnp.float32),
                   jax.ShapeDtypeStruct((B, Hp), jnp.float32)),
        grid=(NT,),
        in_specs=[
            # x and h_prev use constant index_maps: the pipeline fetches them
            # once and keeps them resident across hidden tiles.
            pl.BlockSpec((B, input_size), lambda t: (0, 0)),
            pl.BlockSpec((B, Hp), lambda t: (0, 0)),
            pl.BlockSpec((B, T), lambda t: (0, t)),           # c_prev tile
            pl.BlockSpec((Kp, 4 * T), lambda t: (0, t)),      # weight tile
        ],
        out_specs=(pl.BlockSpec((B, T), lambda t: (0, t)),    # h_next tile
                   pl.BlockSpec((B, T), lambda t: (0, t))),   # c_next tile
        scratch_shapes=[pltpu.VMEM((B, Kp), jnp.float32)],
        compiler_params=pltpu.CompilerParams(
            dimension_semantics=("parallel",),
            vmem_limit_bytes=vmem_limit),
    )(x, h_prev_pad, c_prev_pad, w_fused)
    return h_next, c_next


def xavier_uniform(key, fan_out, fan_in, dtype=jnp.float32):
    # Matches nn.init.xavier_uniform_ on a (fan_out, fan_in) Linear weight.
    bound = (6.0 / (fan_in + fan_out)) ** 0.5
    return jax.random.uniform(key, (fan_out, fan_in), dtype,
                              minval=-bound, maxval=bound)


def make_params(key, input_size, hidden_size, *, max_hidden_tile=512,
                weight_dtype=jnp.bfloat16):
    """Fuse the 8 nn.Linear weights into one pre-transposed tile-packed matrix.

    Returns (w_fused, raw): raw are the unfused f32 Linear weights in module
    order (w_xf, w_hf, w_xi, w_hi, w_xc, w_hc, w_xo, w_ho).  Biases are
    zero-initialized by the module and therefore not materialized.
    """
    keys = jax.random.split(key, 8)
    raw = tuple(
        xavier_uniform(k, hidden_size,
                       input_size if idx % 2 == 0 else hidden_size)
        for idx, k in enumerate(keys))
    w_xf, w_hf, w_xi, w_hi, w_xc, w_hc, w_xo, w_ho = raw

    Hp = _round_up(hidden_size, LANE)
    T = _pick_hidden_tile(Hp, max_hidden_tile)
    NT = Hp // T
    # K layout: [h rows (Hp) | x rows | zero pad] padded to a multiple of 256
    # so the MXU contraction dim is aligned on v6e/v7x (128 on v5e).
    Kp = _round_up(Hp + input_size, 2 * LANE)

    def fused_gate(w_x, w_h):
        # gate(x, h) = h @ w_h.T + x @ w_x.T -> pre-transposed (Kp, Hp) block.
        g = jnp.zeros((Kp, Hp), jnp.float32)
        g = g.at[:hidden_size, :hidden_size].set(w_h.T)
        g = g.at[Hp:Hp + input_size, :hidden_size].set(w_x.T)
        return g

    # (Kp, 4, Hp) in gate order [f, i, c_bar, o]; tile-major packing so every
    # T-wide hidden tile carries its own contiguous, lane-aligned [f,i,c,o]
    # group of columns.
    gates = jnp.stack([fused_gate(w_xf, w_hf), fused_gate(w_xi, w_hi),
                       fused_gate(w_xc, w_hc), fused_gate(w_xo, w_ho)], axis=1)
    w_fused = (gates.reshape(Kp, 4, NT, T)
                    .transpose(0, 2, 1, 3)
                    .reshape(Kp, NT * 4 * T)).astype(weight_dtype)
    return w_fused, raw


def reference_lstm_f32(x, h_prev, c_prev, raw):
    # Pure-f32 mirror of the PyTorch module's forward (unfused, zero biases).
    w_xf, w_hf, w_xi, w_hi, w_xc, w_hc, w_xo, w_ho = raw
    f = jax.nn.sigmoid(x @ w_xf.T + h_prev @ w_hf.T)
    i = jax.nn.sigmoid(x @ w_xi.T + h_prev @ w_hi.T)
    c_bar = jnp.tanh(x @ w_xc.T + h_prev @ w_hc.T)
    c_next = f * c_prev + i * c_bar
    o = jax.nn.sigmoid(x @ w_xo.T + h_prev @ w_ho.T)
    return o * jnp.tanh(c_next), c_next


def reference_lstm_bf16(x, h_prev, c_prev, raw):
    # Mirrors the kernel's precision path: bf16 operands, f32 accumulation,
    # tanh-form sigmoid.
    w_xf, w_hf, w_xi, w_hi, w_xc, w_hc, w_xo, w_ho = raw
    xb = x.astype(jnp.bfloat16)
    hb = h_prev.astype(jnp.bfloat16)

    def gate(w_x, w_h):
        return (jnp.dot(hb, w_h.T.astype(jnp.bfloat16),
                        preferred_element_type=jnp.float32) +
                jnp.dot(xb, w_x.T.astype(jnp.bfloat16),
                        preferred_element_type=jnp.float32))

    sig = lambda v: 0.5 * jnp.tanh(0.5 * v) + 0.5
    f = sig(gate(w_xf, w_hf))
    i = sig(gate(w_xi, w_hi))
    c_bar = jnp.tanh(gate(w_xc, w_hc))
    c_next = f * c_prev + i * c_bar
    o = sig(gate(w_xo, w_ho))
    return o * jnp.tanh(c_next), c_next


if __name__ == "__main__":
    B, input_size, hidden_size = 8, 16, 32

    key = jax.random.PRNGKey(0)
    k_param, k_x, k_h, k_c = jax.random.split(key, 4)

    w_fused, raw = make_params(k_param, input_size, hidden_size)
    x = jax.random.normal(k_x, (B, input_size), jnp.float32)
    h_prev = jax.random.normal(k_h, (B, hidden_size), jnp.float32)
    c_prev = jax.random.normal(k_c, (B, hidden_size), jnp.float32)

    # State lives in padded (B, Hp) layout across steps: pad once here.  The
    # padded columns stay exactly zero (padded weight columns + biases are 0).
    Hp = _round_up(hidden_size, LANE)
    h_pad = jnp.pad(h_prev, ((0, 0), (0, Hp - hidden_size)))
    c_pad = jnp.pad(c_prev, ((0, 0), (0, Hp - hidden_size)))

    h_next_pad, c_next_pad = lstm_cell(x, h_pad, c_pad, w_fused)
    jax.block_until_ready((h_next_pad, c_next_pad))

    h_next = h_next_pad[:, :hidden_size]
    c_next = c_next_pad[:, :hidden_size]

    # Padded columns must remain exactly zero so state can stay resident.
    assert jnp.all(h_next_pad[:, hidden_size:] == 0.0)
    assert jnp.all(c_next_pad[:, hidden_size:] == 0.0)

    # Tight check against the same bf16-operand / f32-accumulate math.
    h_bf, c_bf = reference_lstm_bf16(x, h_prev, c_prev, raw)
    assert jnp.allclose(h_next, h_bf, atol=2e-4, rtol=2e-4)
    assert jnp.allclose(c_next, c_bf, atol=2e-4, rtol=2e-4)

    # Looser sanity check against the pure-f32 module semantics.
    h_f32, c_f32 = reference_lstm_f32(x, h_prev, c_prev, raw)
    assert jnp.allclose(h_next, h_f32, atol=5e-2)
    assert jnp.allclose(c_next, c_f32, atol=5e-2)

    print("KERNEL_OK")
</pallas_src>

<mosaic_0001>
module attributes {stable_mosaic.version = 11 : i64} {
  func.func @lstm_cell_kernel(%arg0: i32, %arg1: memref<8x16xf32, #tpu.memory_space<vmem>>, %arg2: memref<8x128xf32, #tpu.memory_space<vmem>>, %arg3: memref<8x128xf32, #tpu.memory_space<vmem>>, %arg4: memref<256x512xbf16, #tpu.memory_space<vmem>>, %arg5: memref<8x128xf32, #tpu.memory_space<vmem>>, %arg6: memref<8x128xf32, #tpu.memory_space<vmem>>, %arg7: memref<8x256xf32, #tpu.memory_space<vmem>>) attributes {dimension_semantics = [#tpu.dimension_semantics<parallel>], iteration_bounds = array<i64: 1>, scalar_prefetch = 0 : i64, scratch_operands = 1 : i64, tpu.core_type = #tpu.core_type<tc>, window_params = [{pipeline_mode = #tpu.pipeline_mode<synchronous>, transform_indices = @transform_0, window_bounds = array<i64: 8, 16>}, {pipeline_mode = #tpu.pipeline_mode<synchronous>, transform_indices = @transform_1, window_bounds = array<i64: 8, 128>}, {transform_indices = @transform_2, window_bounds = array<i64: 8, 128>}, {transform_indices = @transform_3, window_bounds = array<i64: 256, 512>}, {transform_indices = @transform_4, window_bounds = array<i64: 8, 128>}, {transform_indices = @transform_5, window_bounds = array<i64: 8, 128>}]} {
    %c0 = arith.constant 0 : index
    %c0_0 = arith.constant 0 : index
    %0 = vector.load %arg2[%c0, %c0_0] : memref<8x128xf32, #tpu.memory_space<vmem>>, vector<8x128xf32>
    %c0_1 = arith.constant 0 : index
    %c0_2 = arith.constant 0 : index
    %1 = vector.load %arg7[%c0_1, %c0_2] : memref<8x256xf32, #tpu.memory_space<vmem>>, vector<8x128xf32>
    tpu.vector_store %arg7[%c0_1, %c0_2], %0 {strides = array<i32>} : memref<8x256xf32, #tpu.memory_space<vmem>>, vector<8x128xf32>,
    %cst = arith.constant 0.000000e+00 : f32
    %2 = vector.broadcast %cst : f32 to vector<8x128xf32>
    %c0_3 = arith.constant 0 : index
    %c128 = arith.constant 128 : index
    %3 = vector.load %arg7[%c0_3, %c128] : memref<8x256xf32, #tpu.memory_space<vmem>>, vector<8x128xf32>
    tpu.vector_store %arg7[%c0_3, %c128], %2 {strides = array<i32>} : memref<8x256xf32, #tpu.memory_space<vmem>>, vector<8x128xf32>,
    %c0_4 = arith.constant 0 : index
    %c0_5 = arith.constant 0 : index
    %4 = vector.load %arg1[%c0_4, %c0_5] : memref<8x16xf32, #tpu.memory_space<vmem>>, vector<8x16xf32>
    %c0_6 = arith.constant 0 : index
    %c128_7 = arith.constant 128 : index
    %5 = vector.load %arg7[%c0_6, %c128_7] : memref<8x256xf32, #tpu.memory_space<vmem>>, vector<8x16xf32>
    tpu.vector_store %arg7[%c0_6, %c128_7], %4 {strides = array<i32>} : memref<8x256xf32, #tpu.memory_space<vmem>>, vector<8x16xf32>,
    %c0_8 = arith.constant 0 : index
    %c0_9 = arith.constant 0 : index
    %6 = vector.load %arg7[%c0_8, %c0_9] : memref<8x256xf32, #tpu.memory_space<vmem>>, vector<8x256xf32>
    %7 = arith.truncf %6 : vector<8x256xf32> to vector<8x256xbf16>
    %c0_10 = arith.constant 0 : index
    %c0_11 = arith.constant 0 : index
    %8 = vector.load %arg4[%c0_10, %c0_11] : memref<256x512xbf16, #tpu.memory_space<vmem>>, vector<256x512xbf16>
    %cst_12 = arith.constant dense<0.000000e+00> : vector<8x512xf32>
    %9 = tpu.matmul %7, %8, %cst_12 {dimension_numbers = #tpu.dot_dimension_numbers<[1], [0], [0], [1], [0, 0, 1, 1], [], []>} : vector<8x256xbf16>, vector<256x512xbf16>, vector<8x512xf32> -> vector<8x512xf32>
    %10 = vector.extract_strided_slice %9 {offsets = [0, 0], sizes = [8, 128], strides = [1, 1]} : vector<8x512xf32> to vector<8x128xf32>
    %cst_13 = arith.constant 5.000000e-01 : f32
    %11 = vector.broadcast %cst_13 : f32 to vector<8x128xf32>
    %12 = arith.mulf %11, %10 : vector<8x128xf32>
    %13 = math.tanh %12 : vector<8x128xf32>
    %cst_14 = arith.constant 5.000000e-01 : f32
    %14 = vector.broadcast %cst_14 : f32 to vector<8x128xf32>
    %15 = arith.mulf %14, %13 : vector<8x128xf32>
    %cst_15 = arith.constant 5.000000e-01 : f32
    %16 = vector.broadcast %cst_15 : f32 to vector<8x128xf32>
    %17 = arith.addf %15, %16 : vector<8x128xf32>
    %18 = vector.extract_strided_slice %9 {offsets = [0, 128], sizes = [8, 128], strides = [1, 1]} : vector<8x512xf32> to vector<8x128xf32>
    %cst_16 = arith.constant 5.000000e-01 : f32
    %19 = vector.broadcast %cst_16 : f32 to vector<8x128xf32>
    %20 = arith.mulf %19, %18 : vector<8x128xf32>
    %21 = math.tanh %20 : vector<8x128xf32>
    %cst_17 = arith.constant 5.000000e-01 : f32
    %22 = vector.broadcast %cst_17 : f32 to vector<8x128xf32>
    %23 = arith.mulf %22, %21 : vector<8x128xf32>
    %cst_18 = arith.constant 5.000000e-01 : f32
    %24 = vector.broadcast %cst_18 : f32 to vector<8x128xf32>
    %25 = arith.addf %23, %24 : vector<8x128xf32>
    %26 = vector.extract_strided_slice %9 {offsets = [0, 256], sizes = [8, 128], strides = [1, 1]} : vector<8x512xf32> to vector<8x128xf32>
    %27 = math.tanh %26 : vector<8x128xf32>
    %28 = vector.extract_strided_slice %9 {offsets = [0, 384], sizes = [8, 128], strides = [1, 1]} : vector<8x512xf32> to vector<8x128xf32>
    %cst_19 = arith.constant 5.000000e-01 : f32
    %29 = vector.broadcast %cst_19 : f32 to vector<8x128xf32>
    %30 = arith.mulf %29, %28 : vector<8x128xf32>
    %31 = math.tanh %30 : vector<8x128xf32>
    %cst_20 = arith.constant 5.000000e-01 : f32
    %32 = vector.broadcast %cst_20 : f32 to vector<8x128xf32>
    %33 = arith.mulf %32, %31 : vector<8x128xf32>
    %cst_21 = arith.constant 5.000000e-01 : f32
    %34 = vector.broadcast %cst_21 : f32 to vector<8x128xf32>
    %35 = arith.addf %33, %34 : vector<8x128xf32>
    %c0_22 = arith.constant 0 : index
    %c0_23 = arith.constant 0 : index
    %36 = vector.load %arg3[%c0_22, %c0_23] : memref<8x128xf32, #tpu.memory_space<vmem>>, vector<8x128xf32>
    %37 = arith.mulf %17, %36 : vector<8x128xf32>
    %38 = arith.mulf %25, %27 : vector<8x128xf32>
    %39 = arith.addf %37, %38 : vector<8x128xf32>
    %40 = math.tanh %39 : vector<8x128xf32>
    %41 = arith.mulf %35, %40 : vector<8x128xf32>
    %c0_24 = arith.constant 0 : index
    %c0_25 = arith.constant 0 : index
    %42 = vector.load %arg5[%c0_24, %c0_25] : memref<8x128xf32, #tpu.memory_space<vmem>>, vector<8x128xf32>
    tpu.vector_store %arg5[%c0_24, %c0_25], %41 {strides = array<i32>} : memref<8x128xf32, #tpu.memory_space<vmem>>, vector<8x128xf32>,
    %c0_26 = arith.constant 0 : index
    %c0_27 = arith.constant 0 : index
    %43 = vector.load %arg6[%c0_26, %c0_27] : memref<8x128xf32, #tpu.memory_space<vmem>>, vector<8x128xf32>
    tpu.vector_store %arg6[%c0_26, %c0_27], %39 {strides = array<i32>} : memref<8x128xf32, #tpu.memory_space<vmem>>, vector<8x128xf32>,
    return
  }
  func.func @transform_0(%arg0: i32) -> (i32, i32) {
    %c0_i32 = arith.constant 0 : i32
    %c0_i32_0 = arith.constant 0 : i32
    %c0_i32_1 = arith.constant 0 : i32
    return %c0_i32, %c0_i32_0 : i32, i32
  }
  func.func @transform_1(%arg0: i32) -> (i32, i32) {
    %c0_i32 = arith.constant 0 : i32
    %c0_i32_0 = arith.constant 0 : i32
    %c0_i32_1 = arith.constant 0 : i32
    return %c0_i32, %c0_i32_0 : i32, i32
  }
  func.func @transform_2(%arg0: i32) -> (i32, i32) {
    %c0_i32 = arith.constant 0 : i32
    %c0_i32_0 = arith.constant 0 : i32
    return %c0_i32, %arg0 : i32, i32
  }
  func.func @transform_3(%arg0: i32) -> (i32, i32) {
    %c0_i32 = arith.constant 0 : i32
    %c0_i32_0 = arith.constant 0 : i32
    return %c0_i32, %arg0 : i32, i32
  }
  func.func @transform_4(%arg0: i32) -> (i32, i32) {
    %c0_i32 = arith.constant 0 : i32
    %c0_i32_0 = arith.constant 0 : i32
    return %c0_i32, %arg0 : i32, i32
  }
  func.func @transform_5(%arg0: i32) -> (i32, i32) {
    %c0_i32 = arith.constant 0 : i32
    %c0_i32_0 = arith.constant 0 : i32
    return %c0_i32, %arg0 : i32, i32
  }
}

</mosaic_0001>

<llo_original>
// kernel: tpu_custom_call.1
$region0: #{tpu_custom_call.1}
  #allocation0 [shape = 'u32[]', space=smem, size = 0x4, offset = 0x4, fixed_abs, tag = 'smem constant byte address 0x4 - core index']
  #allocation1 [shape = 'u32[144,128]{1,0:T(1,128)}', space=vmem, size = 0x12000, scoped, tag = 'internal scratch']
  #allocation2 [shape = 'f32[8,256]{1,0:T(8,128)}', space=vmem, size = 0x2000, scoped, tag = 'scratch operand']
  %s0 = inlined_call_operand.hbm [shape: f32[8,16], index: 0, kind: input, shape index: {}]
  %s1 = inlined_call_operand.hbm [shape: f32[8,128], index: 1, kind: input, shape index: {}]
  %s2 = inlined_call_operand.hbm [shape: f32[8,128], index: 2, kind: input, shape index: {}]
  %s3 = inlined_call_operand.hbm [shape: bf16[256,512], index: 3, kind: input, shape index: {}]
  %s4 = inlined_call_operand.hbm [shape: f32[8,128], index: 4, kind: output, shape index: {0}]
  %s5 = inlined_call_operand.hbm [shape: f32[8,128], index: 5, kind: output, shape index: {1}]
  %6 = xla_tuple %s4, %s5
  %s7 = sld [smem:[#allocation0]]
  $region50: #{tpu_custom_call.1} parent=0
    _
  %s9 = ssub.s32 1, %s7
  %s10 = scalar_select 0, %s9, %s7
  $region1: #{tpu_custom_call.1} parent=0
    #allocation3 [shape = 'u8[4096]{0}', space=vmem, size = 0x1000, scoped, tag = 'input window, operand 0, single buffered']
    #allocation4 [shape = 's32[1]{0}', space=sflag, size = 0x4, scoped, tag = 'scoped memory for tpu_custom_call.1']
    #allocation5 [shape = 's32[1]{0}', space=sflag, size = 0x4, scoped, tag = 'scoped memory for tpu_custom_call.1']
    #allocation6 [shape = 'u8[4096]{0}', space=vmem, size = 0x1000, scoped, tag = 'input window, operand 1, single buffered']
    #allocation7 [shape = 's32[1]{0}', space=sflag, size = 0x4, scoped, tag = 'scoped memory for tpu_custom_call.1']
    #allocation8 [shape = 'u8[4096]{0}', space=vmem, size = 0x1000, scoped, tag = 'input window, operand 2, single buffered']
    #allocation9 [shape = 'u8[262144]{0}', space=vmem, size = 0x40000, scoped, tag = 'input window, operand 3, single buffered']
    #allocation10 [shape = 's32[1]{0}', space=sflag, size = 0x4, scoped, tag = 'scoped memory for tpu_custom_call.1']
    #allocation11 [shape = 'u8[4096]{0}', space=vmem, size = 0x1000, scoped, tag = 'output window, operand 0, single buffered']
    #allocation12 [shape = 'u8[4096]{0}', space=vmem, size = 0x1000, scoped, tag = 'output window, operand 1, single buffered']
    #allocation13 [shape = 's32[1]{0}', space=sflag, size = 0x4, scoped, tag = 'scoped memory for tpu_custom_call.1']
    %11 = vsyncpa [#allocation4], 0
    %12 = vsyncpa [#allocation7], 0
    %13 = vsyncpa [#allocation10], 0
    %14 = vsyncpa [#allocation5], 0
    %15 = vsyncpa [#allocation13], 0
    // Predicated region
    $region2: #{tpu_custom_call.1} parent=1 // pred_check
      _
    $region3: #{tpu_custom_call.1} parent=1 // pred_check_branch
      %17 = sbr.rel (0) target = $region5
    $region4: #{tpu_custom_call.1} parent=1 // pred_region
      %s19 = ssub.s32 128, 128
      %20 = vsyncadd [#allocation4], %s19
      %s22 = sshll.u32 [#allocation3], 4
      %s23 = int_to_ptr.vmem [resolvable:$true] %s22
      %25 = dma.hbm_to_vmem [thread:$0]  %s0, 128, %s23, [#allocation4]
    $region5: #{tpu_custom_call.1} parent=1 // pred_fallthru
      _
    // Predicated region
    $region6: #{tpu_custom_call.1} parent=1 // pred_check
      _
    $region7: #{tpu_custom_call.1} parent=1 // pred_check_branch
      %27 = sbr.rel (0) target = $region9
    $region8: #{tpu_custom_call.1} parent=1 // pred_region
      %s29 = ssub.s32 128, 128
      %30 = vsyncadd [#allocation7], %s29
      %s32 = sshll.u32 [#allocation6], 4
      %s33 = int_to_ptr.vmem [resolvable:$true] %s32
      %35 = dma.hbm_to_vmem [thread:$0]  %s1, 128, %s33, [#allocation7]
    $region9: #{tpu_custom_call.1} parent=1 // pred_fallthru
      _
    // Predicated region
    $region10: #{tpu_custom_call.1} parent=1 // pred_check
      _
    $region11: #{tpu_custom_call.1} parent=1 // pred_check_branch
      %37 = sbr.rel (0) target = $region13
    $region12: #{tpu_custom_call.1} parent=1 // pred_region
      %s39 = ssub.s32 128, 128
      %40 = vsyncadd [#allocation7], %s39
      %s42 = sshll.u32 [#allocation8], 4
      %s43 = int_to_ptr.vmem [resolvable:$true] %s42
      %45 = dma.hbm_to_vmem [thread:$0]  %s2, 128, %s43, [#allocation7]
    $region13: #{tpu_custom_call.1} parent=1 // pred_fallthru
      _
    // Predicated region
    $region14: #{tpu_custom_call.1} parent=1 // pred_check
      _
    $region15: #{tpu_custom_call.1} parent=1 // pred_check_branch
      %47 = sbr.rel (0) target = $region17
    $region16: #{tpu_custom_call.1} parent=1 // pred_region
      %s49 = ssub.s32 8192, 8192
      %50 = vsyncadd [#allocation10], %s49
      %s51 = sshll.u32 [#allocation9], 4
      %s52 = int_to_ptr.vmem [resolvable:$true] %s51
      %57 = dma.hbm_to_vmem [thread:$0]  %s3, 8192, %s52, [#allocation10], 256, 256, 16
    $region17: #{tpu_custom_call.1} parent=1 // pred_fallthru
      _
    // Predicated region
    $region18: #{tpu_custom_call.1} parent=1 // pred_check
      _
    $region19: #{tpu_custom_call.1} parent=1 // pred_check_branch
      %59 = sbr.rel (0) target = $region21
    $region20: #{tpu_custom_call.1} parent=1 // pred_region
      %60 = dma.done [#allocation4], 128
    $region21: #{tpu_custom_call.1} parent=1 // pred_fallthru
      _
    // Predicated region
    $region22: #{tpu_custom_call.1} parent=1 // pred_check
      _
    $region23: #{tpu_custom_call.1} parent=1 // pred_check_branch
      %62 = sbr.rel (0) target = $region25
    $region24: #{tpu_custom_call.1} parent=1 // pred_region
      %63 = dma.done [#allocation7], 128
    $region25: #{tpu_custom_call.1} parent=1 // pred_fallthru
      _
    // Predicated region
    $region26: #{tpu_custom_call.1} parent=1 // pred_check
      _
    $region27: #{tpu_custom_call.1} parent=1 // pred_check_branch
      %65 = sbr.rel (0) target = $region29
    $region28: #{tpu_custom_call.1} parent=1 // pred_region
      %66 = dma.done [#allocation7], 128
    $region29: #{tpu_custom_call.1} parent=1 // pred_fallthru
      _
    // Predicated region
    $region30: #{tpu_custom_call.1} parent=1 // pred_check
      _
    $region31: #{tpu_custom_call.1} parent=1 // pred_check_branch
      %68 = sbr.rel (0) target = $region33
    $region32: #{tpu_custom_call.1} parent=1 // pred_region
      %69 = dma.done [#allocation10], 8192
    $region33: #{tpu_custom_call.1} parent=1 // pred_fallthru
      _
    %v70 = vld [vmem:[#allocation6] sm:$0xff]
    %71 = vst [vmem:[#allocation2] sm:$0xff] %v70
    %72 = vst [vmem:[#allocation2 + $0x8] sm:$0xff] 0.0
    %v73 = vld [vmem:[#allocation3] sm:$0xff]
    %vm74 = vcmask 130048
    %75 = vst.msk [vmem:[#allocation2 + $0x8] sm:$0xff] %vm74, %v73
    %v76 = vld [vmem:[#allocation2] sm:$0xff]
    %v77 = vld [vmem:[#allocation2 + $0x8] sm:$0xff]
    %v78 = vpack.c.bf16 %v76, %v76
    %v79 = vpack.c.bf16 %v77, %v77
    %v80 = vld [vmem:[#allocation9] sm:$0xff]
    %v81 = vld [vmem:[#allocation9 + $0x8] sm:$0xff]
    %v82 = vld [vmem:[#allocation9 + $0x10] sm:$0xff]
    %v83 = vld [vmem:[#allocation9 + $0x18] sm:$0xff]
    %v84 = vld [vmem:[#allocation9 + $0x20] sm:$0xff]
    %v85 = vld [vmem:[#allocation9 + $0x28] sm:$0xff]
    %v86 = vld [vmem:[#allocation9 + $0x30] sm:$0xff]
    %v87 = vld [vmem:[#allocation9 + $0x38] sm:$0xff]
    %v88 = vld [vmem:[#allocation9 + $0x40] sm:$0xff]
    %v89 = vld [vmem:[#allocation9 + $0x48] sm:$0xff]
    %v90 = vld [vmem:[#allocation9 + $0x50] sm:$0xff]
    %v91 = vld [vmem:[#allocation9 + $0x58] sm:$0xff]
    %v92 = vld [vmem:[#allocation9 + $0x60] sm:$0xff]
    %v93 = vld [vmem:[#allocation9 + $0x68] sm:$0xff]
    %v94 = vld [vmem:[#allocation9 + $0x70] sm:$0xff]
    %v95 = vld [vmem:[#allocation9 + $0x78] sm:$0xff]
    %v96 = vld [vmem:[#allocation9 + $0x80] sm:$0xff]
    %v97 = vld [vmem:[#allocation9 + $0x88] sm:$0xff]
    %v98 = vld [vmem:[#allocation9 + $0x90] sm:$0xff]
    %v99 = vld [vmem:[#allocation9 + $0x98] sm:$0xff]
    %v100 = vld [vmem:[#allocation9 + $0xa0] sm:$0xff]
    %v101 = vld [vmem:[#allocation9 + $0xa8] sm:$0xff]
    %v102 = vld [vmem:[#allocation9 + $0xb0] sm:$0xff]
    %v103 = vld [vmem:[#allocation9 + $0xb8] sm:$0xff]
    %v104 = vld [vmem:[#allocation9 + $0xc0] sm:$0xff]
    %v105 = vld [vmem:[#allocation9 + $0xc8] sm:$0xff]
    %v106 = vld [vmem:[#allocation9 + $0xd0] sm:$0xff]
    %v107 = vld [vmem:[#allocation9 + $0xd8] sm:$0xff]
    %v108 = vld [vmem:[#allocation9 + $0xe0] sm:$0xff]
    %v109 = vld [vmem:[#allocation9 + $0xe8] sm:$0xff]
    %v110 = vld [vmem:[#allocation9 + $0xf0] sm:$0xff]
    %v111 = vld [vmem:[#allocation9 + $0xf8] sm:$0xff]
    %v112 = vld [vmem:[#allocation9 + $0x100] sm:$0xff]
    %v113 = vld [vmem:[#allocation9 + $0x108] sm:$0xff]
    %v114 = vld [vmem:[#allocation9 + $0x110] sm:$0xff]
    %v115 = vld [vmem:[#allocation9 + $0x118] sm:$0xff]
    %v116 = vld [vmem:[#allocation9 + $0x120] sm:$0xff]
    %v117 = vld [vmem:[#allocation9 + $0x128] sm:$0xff]
    %v118 = vld [vmem:[#allocation9 + $0x130] sm:$0xff]
    %v119 = vld [vmem:[#allocation9 + $0x138] sm:$0xff]
    %v120 = vld [vmem:[#allocation9 + $0x140] sm:$0xff]
    %v121 = vld [vmem:[#allocation9 + $0x148] sm:$0xff]
    %v122 = vld [vmem:[#allocation9 + $0x150] sm:$0xff]
    %v123 = vld [vmem:[#allocation9 + $0x158] sm:$0xff]
    %v124 = vld [vmem:[#allocation9 + $0x160] sm:$0xff]
    %v125 = vld [vmem:[#allocation9 + $0x168] sm:$0xff]
    %v126 = vld [vmem:[#allocation9 + $0x170] sm:$0xff]
    %v127 = vld [vmem:[#allocation9 + $0x178] sm:$0xff]
    %v128 = vld [vmem:[#allocation9 + $0x180] sm:$0xff]
    %v129 = vld [vmem:[#allocation9 + $0x188] sm:$0xff]
    %v130 = vld [vmem:[#allocation9 + $0x190] sm:$0xff]
    %v131 = vld [vmem:[#allocation9 + $0x198] sm:$0xff]
    %v132 = vld [vmem:[#allocation9 + $0x1a0] sm:$0xff]
    %v133 = vld [vmem:[#allocation9 + $0x1a8] sm:$0xff]
    %v134 = vld [vmem:[#allocation9 + $0x1b0] sm:$0xff]
    %v135 = vld [vmem:[#allocation9 + $0x1b8] sm:$0xff]
    %v136 = vld [vmem:[#allocation9 + $0x1c0] sm:$0xff]
    %v137 = vld [vmem:[#allocation9 + $0x1c8] sm:$0xff]
    %v138 = vld [vmem:[#allocation9 + $0x1d0] sm:$0xff]
    %v139 = vld [vmem:[#allocation9 + $0x1d8] sm:$0xff]
    %v140 = vld [vmem:[#allocation9 + $0x1e0] sm:$0xff]
    %v141 = vld [vmem:[#allocation9 + $0x1e8] sm:$0xff]
    %v142 = vld [vmem:[#allocation9 + $0x1f0] sm:$0xff]
    %v143 = vld [vmem:[#allocation9 + $0x1f8] sm:$0xff]
    %v208 = vunpack.c.l.b16 %v80
    %v209 = vunpack.c.h.b16 %v80
    %v210 = vunpack.c.l.b16 %v81
    %v211 = vunpack.c.h.b16 %v81
    %v212 = vunpack.c.l.b16 %v82
    %v213 = vunpack.c.h.b16 %v82
    %v214 = vunpack.c.l.b16 %v83
    %v215 = vunpack.c.h.b16 %v83
    %v216 = vunpack.c.l.b16 %v84
    %v217 = vunpack.c.h.b16 %v84
    %v218 = vunpack.c.l.b16 %v85
    %v219 = vunpack.c.h.b16 %v85
    %v220 = vunpack.c.l.b16 %v86
    %v221 = vunpack.c.h.b16 %v86
    %v222 = vunpack.c.l.b16 %v87
    %v223 = vunpack.c.h.b16 %v87
    %v224 = vunpack.c.l.b16 %v88
    %v225 = vunpack.c.h.b16 %v88
    %v226 = vunpack.c.l.b16 %v89
    %v227 = vunpack.c.h.b16 %v89
    %v228 = vunpack.c.l.b16 %v90
    %v229 = vunpack.c.h.b16 %v90
    %v230 = vunpack.c.l.b16 %v91
    %v231 = vunpack.c.h.b16 %v91
    %v232 = vunpack.c.l.b16 %v92
    %v233 = vunpack.c.h.b16 %v92
    %v234 = vunpack.c.l.b16 %v93
    %v235 = vunpack.c.h.b16 %v93
    %v236 = vunpack.c.l.b16 %v94
    %v237 = vunpack.c.h.b16 %v94
    %v238 = vunpack.c.l.b16 %v95
    %v239 = vunpack.c.h.b16 %v95
    %v240 = vunpack.c.l.b16 %v96
    %v241 = vunpack.c.h.b16 %v96
    %v242 = vunpack.c.l.b16 %v97
    %v243 = vunpack.c.h.b16 %v97
    %v244 = vunpack.c.l.b16 %v98
    %v245 = vunpack.c.h.b16 %v98
    %v246 = vunpack.c.l.b16 %v99
    %v247 = vunpack.c.h.b16 %v99
    %v248 = vunpack.c.l.b16 %v100
    %v249 = vunpack.c.h.b16 %v100
    %v250 = vunpack.c.l.b16 %v101
    %v251 = vunpack.c.h.b16 %v101
    %v252 = vunpack.c.l.b16 %v102
    %v253 = vunpack.c.h.b16 %v102
    %v254 = vunpack.c.l.b16 %v103
    %v255 = vunpack.c.h.b16 %v103
    %v256 = vunpack.c.l.b16 %v104
    %v257 = vunpack.c.h.b16 %v104
    %v258 = vunpack.c.l.b16 %v105
    %v259 = vunpack.c.h.b16 %v105
    %v260 = vunpack.c.l.b16 %v106
    %v261 = vunpack.c.h.b16 %v106
    %v262 = vunpack.c.l.b16 %v107
    %v263 = vunpack.c.h.b16 %v107
    %v264 = vunpack.c.l.b16 %v108
    %v265 = vunpack.c.h.b16 %v108
    %v266 = vunpack.c.l.b16 %v109
    %v267 = vunpack.c.h.b16 %v109
    %v268 = vunpack.c.l.b16 %v110
    %v269 = vunpack.c.h.b16 %v110
    %v270 = vunpack.c.l.b16 %v111
    %v271 = vunpack.c.h.b16 %v111
    %v272 = vunpack.c.l.b16 %v112
    %v273 = vunpack.c.h.b16 %v112
    %v274 = vunpack.c.l.b16 %v113
    %v275 = vunpack.c.h.b16 %v113
    %v276 = vunpack.c.l.b16 %v114
    %v277 = vunpack.c.h.b16 %v114
    %v278 = vunpack.c.l.b16 %v115
    %v279 = vunpack.c.h.b16 %v115
    %v280 = vunpack.c.l.b16 %v116
    %v281 = vunpack.c.h.b16 %v116
    %v282 = vunpack.c.l.b16 %v117
    %v283 = vunpack.c.h.b16 %v117
    %v284 = vunpack.c.l.b16 %v118
    %v285 = vunpack.c.h.b16 %v118
    %v286 = vunpack.c.l.b16 %v119
    %v287 = vunpack.c.h.b16 %v119
    %v288 = vunpack.c.l.b16 %v120
    %v289 = vunpack.c.h.b16 %v120
    %v290 = vunpack.c.l.b16 %v121
    %v291 = vunpack.c.h.b16 %v121
    %v292 = vunpack.c.l.b16 %v122
    %v293 = vunpack.c.h.b16 %v122
    %v294 = vunpack.c.l.b16 %v123
    %v295 = vunpack.c.h.b16 %v123
    %v296 = vunpack.c.l.b16 %v124
    %v297 = vunpack.c.h.b16 %v124
    %v298 = vunpack.c.l.b16 %v125
    %v299 = vunpack.c.h.b16 %v125
    %v300 = vunpack.c.l.b16 %v126
    %v301 = vunpack.c.h.b16 %v126
    %v302 = vunpack.c.l.b16 %v127
    %v303 = vunpack.c.h.b16 %v127
    %v304 = vunpack.c.l.b16 %v128
    %v305 = vunpack.c.h.b16 %v128
    %v306 = vunpack.c.l.b16 %v129
    %v307 = vunpack.c.h.b16 %v129
    %v308 = vunpack.c.l.b16 %v130
    %v309 = vunpack.c.h.b16 %v130
    %v310 = vunpack.c.l.b16 %v131
    %v311 = vunpack.c.h.b16 %v131
    %v312 = vunpack.c.l.b16 %v132
    %v313 = vunpack.c.h.b16 %v132
    %v314 = vunpack.c.l.b16 %v133
    %v315 = vunpack.c.h.b16 %v133
    %v316 = vunpack.c.l.b16 %v134
    %v317 = vunpack.c.h.b16 %v134
    %v318 = vunpack.c.l.b16 %v135
    %v319 = vunpack.c.h.b16 %v135
    %v320 = vunpack.c.l.b16 %v136
    %v321 = vunpack.c.h.b16 %v136
    %v322 = vunpack.c.l.b16 %v137
    %v323 = vunpack.c.h.b16 %v137
    %v324 = vunpack.c.l.b16 %v138
    %v325 = vunpack.c.h.b16 %v138
    %v326 = vunpack.c.l.b16 %v139
    %v327 = vunpack.c.h.b16 %v139
    %v328 = vunpack.c.l.b16 %v140
    %v329 = vunpack.c.h.b16 %v140
    %v330 = vunpack.c.l.b16 %v141
    %v331 = vunpack.c.h.b16 %v141
    %v332 = vunpack.c.l.b16 %v142
    %v333 = vunpack.c.h.b16 %v142
    %v334 = vunpack.c.l.b16 %v143
    %v335 = vunpack.c.h.b16 %v143
    %v336 = vpack.c.b16 %v212, %v208
    %v337 = vpack.c.b16 %v213, %v209
    %v338 = vpack.c.b16 %v214, %v210
    %v339 = vpack.c.b16 %v215, %v211
    %v340 = vpack.c.b16 %v220, %v216
    %v341 = vpack.c.b16 %v221, %v217
    %v342 = vpack.c.b16 %v222, %v218
    %v343 = vpack.c.b16 %v223, %v219
    %v344 = vpack.c.b16 %v228, %v224
    %v345 = vpack.c.b16 %v229, %v225
    %v346 = vpack.c.b16 %v230, %v226
    %v347 = vpack.c.b16 %v231, %v227
    %v348 = vpack.c.b16 %v236, %v232
    %v349 = vpack.c.b16 %v237, %v233
    %v350 = vpack.c.b16 %v238, %v234
    %v351 = vpack.c.b16 %v239, %v235
    %v352 = vpack.c.b16 %v244, %v240
    %v353 = vpack.c.b16 %v245, %v241
    %v354 = vpack.c.b16 %v246, %v242
    %v355 = vpack.c.b16 %v247, %v243
    %v356 = vpack.c.b16 %v252, %v248
    %v357 = vpack.c.b16 %v253, %v249
    %v358 = vpack.c.b16 %v254, %v250
    %v359 = vpack.c.b16 %v255, %v251
    %v360 = vpack.c.b16 %v260, %v256
    %v361 = vpack.c.b16 %v261, %v257
    %v362 = vpack.c.b16 %v262, %v258
    %v363 = vpack.c.b16 %v263, %v259
    %v364 = vpack.c.b16 %v268, %v264
    %v365 = vpack.c.b16 %v269, %v265
    %v366 = vpack.c.b16 %v270, %v266
    %v367 = vpack.c.b16 %v271, %v267
    %v368 = vpack.c.b16 %v276, %v272
    %v369 = vpack.c.b16 %v277, %v273
    %v370 = vpack.c.b16 %v278, %v274
    %v371 = vpack.c.b16 %v279, %v275
    %v372 = vpack.c.b16 %v284, %v280
    %v373 = vpack.c.b16 %v285, %v281
    %v374 = vpack.c.b16 %v286, %v282
    %v375 = vpack.c.b16 %v287, %v283
    %v376 = vpack.c.b16 %v292, %v288
    %v377 = vpack.c.b16 %v293, %v289
    %v378 = vpack.c.b16 %v294, %v290
    %v379 = vpack.c.b16 %v295, %v291
    %v380 = vpack.c.b16 %v300, %v296
    %v381 = vpack.c.b16 %v301, %v297
    %v382 = vpack.c.b16 %v302, %v298
    %v383 = vpack.c.b16 %v303, %v299
    %v384 = vpack.c.b16 %v308, %v304
    %v385 = vpack.c.b16 %v309, %v305
    %v386 = vpack.c.b16 %v310, %v306
    %v387 = vpack.c.b16 %v311, %v307
    %v388 = vpack.c.b16 %v316, %v312
    %v389 = vpack.c.b16 %v317, %v313
    %v390 = vpack.c.b16 %v318, %v314
    %v391 = vpack.c.b16 %v319, %v315
    %v392 = vpack.c.b16 %v324, %v320
    %v393 = vpack.c.b16 %v325, %v321
    %v394 = vpack.c.b16 %v326, %v322
    %v395 = vpack.c.b16 %v327, %v323
    %v396 = vpack.c.b16 %v332, %v328
    %v397 = vpack.c.b16 %v333, %v329
    %v398 = vpack.c.b16 %v334, %v330
    %v399 = vpack.c.b16 %v335, %v331
    %464 = vmatprep.subr.bf16.mxu0 %v337
    %465 = vmatpush1.bf16.msra.mxu0 %v336
    %466 = vmatprep.subr.bf16.mxu0 %v341
    %467 = vmatpush1.bf16.msra.mxu0 %v340
    %468 = vmatprep.subr.bf16.mxu0 %v345
    %469 = vmatpush1.bf16.msra.mxu0 %v344
    %470 = vmatprep.subr.bf16.mxu0 %v349
    %471 = vmatpush1.bf16.msra.mxu0 %v348
    %472 = vmatprep.subr.bf16.mxu0 %v353
    %473 = vmatpush1.bf16.msra.mxu0 %v352
    %474 = vmatprep.subr.bf16.mxu0 %v357
    %475 = vmatpush1.bf16.msra.mxu0 %v356
    %476 = vmatprep.subr.bf16.mxu0 %v361
    %477 = vmatpush1.bf16.msra.mxu0 %v360
    %478 = vmatprep.subr.bf16.mxu0 %v365
    %479 = vmatpush1.bf16.msra.mxu0 %v364
    %480 = vmatprep.subr.bf16.mxu0 %v369
    %481 = vmatpush1.bf16.msra.mxu0 %v368
    %482 = vmatprep.subr.bf16.mxu0 %v373
    %483 = vmatpush1.bf16.msra.mxu0 %v372
    %484 = vmatprep.subr.bf16.mxu0 %v377
    %485 = vmatpush1.bf16.msra.mxu0 %v376
    %486 = vmatprep.subr.bf16.mxu0 %v381
    %487 = vmatpush1.bf16.msra.mxu0 %v380
    %488 = vmatprep.subr.bf16.mxu0 %v385
    %489 = vmatpush1.bf16.msra.mxu0 %v384
    %490 = vmatprep.subr.bf16.mxu0 %v389
    %491 = vmatpush1.bf16.msra.mxu0 %v388
    %492 = vmatprep.subr.bf16.mxu0 %v393
    %493 = vmatpush1.bf16.msra.mxu0 %v392
    %494 = vmatprep.subr.bf16.mxu0 %v397
    %495 = vmatpush1.bf16.msra.mxu0 %v396
    %496 = vmatprep.mubr.bf16.mxu0 %v79
    %497 = vmatmul.mubr.bf16.gmra.mrb[0].mxu0 %v78
    %v498 = vpop.f32.mrb[0].mxu0
    %v499 = vadd.f32 0.0, %v498
    %v500 = vpop.f32.mrb[0].mxu0
    %v501 = vadd.f32 0.0, %v500
    %v502 = vpop.f32.mrb[0].mxu0
    %v503 = vpop.f32.mrb[0].mxu0
    %504 = vdwg.mxu0
    %505 = vmatprep.subr.bf16.mxu0 %v339
    %506 = vmatpush1.bf16.msra.mxu0 %v338
    %507 = vmatprep.subr.bf16.mxu0 %v343
    %508 = vmatpush1.bf16.msra.mxu0 %v342
    %509 = vmatprep.subr.bf16.mxu0 %v347
    %510 = vmatpush1.bf16.msra.mxu0 %v346
    %511 = vmatprep.subr.bf16.mxu0 %v351
    %512 = vmatpush1.bf16.msra.mxu0 %v350
    %513 = vmatprep.subr.bf16.mxu0 %v355
    %514 = vmatpush1.bf16.msra.mxu0 %v354
    %515 = vmatprep.subr.bf16.mxu0 %v359
    %516 = vmatpush1.bf16.msra.mxu0 %v358
    %517 = vmatprep.subr.bf16.mxu0 %v363
    %518 = vmatpush1.bf16.msra.mxu0 %v362
    %519 = vmatprep.subr.bf16.mxu0 %v367
    %520 = vmatpush1.bf16.msra.mxu0 %v366
    %521 = vmatprep.subr.bf16.mxu0 %v371
    %522 = vmatpush1.bf16.msra.mxu0 %v370
    %523 = vmatprep.subr.bf16.mxu0 %v375
    %524 = vmatpush1.bf16.msra.mxu0 %v374
    %525 = vmatprep.subr.bf16.mxu0 %v379
    %526 = vmatpush1.bf16.msra.mxu0 %v378
    %527 = vmatprep.subr.bf16.mxu0 %v383
    %528 = vmatpush1.bf16.msra.mxu0 %v382
    %529 = vmatprep.subr.bf16.mxu0 %v387
    %530 = vmatpush1.bf16.msra.mxu0 %v386
    %531 = vmatprep.subr.bf16.mxu0 %v391
    %532 = vmatpush1.bf16.msra.mxu0 %v390
    %533 = vmatprep.subr.bf16.mxu0 %v395
    %534 = vmatpush1.bf16.msra.mxu0 %v394
    %535 = vmatprep.subr.bf16.mxu0 %v399
    %536 = vmatpush1.bf16.msra.mxu0 %v398
    %537 = vmatprep.mubr.bf16.mxu0 %v79
    %538 = vmatmul.mubr.bf16.gmra.mrb[0].mxu0 %v78
    %v539 = vpop.f32.mrb[0].mxu0
    %v540 = vadd.f32 0.0, %v539
    %v541 = vpop.f32.mrb[0].mxu0
    %v542 = vadd.f32 0.0, %v541
    %v543 = vpop.f32.mrb[0].mxu0
    %v544 = vpop.f32.mrb[0].mxu0
    %545 = vdwg.mxu0
    %v546 = vmul.f32 %v499, 0.5
    %v547 = vtanh.pop %v546
    %v548 = vmul.f32 %v547, 0.5
    %v549 = vadd.f32 %v548, 0.5
    %v550 = vmul.f32 %v501, 0.5
    %v551 = vtanh.pop %v550
    %v552 = vmul.f32 %v551, 0.5
    %v553 = vadd.f32 %v552, 0.5
    %v554 = vtanh.pop %v540
    %v555 = vmul.f32 %v542, 0.5
    %v556 = vtanh.pop %v555
    %v557 = vmul.f32 %v556, 0.5
    %v558 = vadd.f32 %v557, 0.5
    %v559 = vld [vmem:[#allocation8] sm:$0xff]
    %v560 = vmul.f32 %v549, %v559
    %v561 = vmul.f32 %v553, %v554
    %v562 = vadd.f32 %v560, %v561
    %v563 = vtanh.pop %v562
    %v564 = vmul.f32 %v558, %v563
    %565 = vst [vmem:[#allocation11] sm:$0xff] %v564
    %566 = vst [vmem:[#allocation12] sm:$0xff] %v562
    // Predicated region
    $region34: #{tpu_custom_call.1} parent=1 // pred_check
      _
    $region35: #{tpu_custom_call.1} parent=1 // pred_check_branch
      %568 = sbr.rel (0) target = $region37
    $region36: #{tpu_custom_call.1} parent=1 // pred_region
      %s570 = ssub.s32 128, 128
      %571 = vsyncadd [#allocation5], %s570
      %s573 = sshll.u32 [#allocation11], 4
      %s574 = int_to_ptr.vmem [resolvable:$true] %s573
      %576 = dma.vmem_to_hbm [thread:$0]  %s574, 128, %s4, [#allocation5]
    $region37: #{tpu_custom_call.1} parent=1 // pred_fallthru
      _
    // Predicated region
    $region38: #{tpu_custom_call.1} parent=1 // pred_check
      _
    $region39: #{tpu_custom_call.1} parent=1 // pred_check_branch
      %578 = sbr.rel (0) target = $region41
    $region40: #{tpu_custom_call.1} parent=1 // pred_region
      %s580 = ssub.s32 128, 128
      %581 = vsyncadd [#allocation13], %s580
      %s583 = sshll.u32 [#allocation12], 4
      %s584 = int_to_ptr.vmem [resolvable:$true] %s583
      %586 = dma.vmem_to_hbm [thread:$0]  %s584, 128, %s5, [#allocation13]
    $region41: #{tpu_custom_call.1} parent=1 // pred_fallthru
      _
    // Predicated region
    $region42: #{tpu_custom_call.1} parent=1 // pred_check
      _
    $region43: #{tpu_custom_call.1} parent=1 // pred_check_branch
      %588 = sbr.rel (0) target = $region45
    $region44: #{tpu_custom_call.1} parent=1 // pred_region
      %589 = dma.done [#allocation5], 128
    $region45: #{tpu_custom_call.1} parent=1 // pred_fallthru
      _
    // Predicated region
    $region46: #{tpu_custom_call.1} parent=1 // pred_check
      _
    $region47: #{tpu_custom_call.1} parent=1 // pred_check_branch
      %591 = sbr.rel (0) target = $region49
    $region48: #{tpu_custom_call.1} parent=1 // pred_region
      %592 = dma.done [#allocation13], 128
    $region49: #{tpu_custom_call.1} parent=1 // pred_fallthru
      _
    %593 = vsyncpa [#allocation4], 1
    %594 = vsyncpa [#allocation7], 1
    %595 = vsyncpa [#allocation10], 1
    %596 = vsyncpa [#allocation5], 1
    %597 = vsyncpa [#allocation13], 1

</llo_original>
